<compile_context>
chip_gen: v7x
topology: tpu7x:2x2x1
jax: 0.10.0
libtpu: 0.0.40
codegen_flags: <defaults>
</compile_context>

<pallas_src>
import numpy as np

import jax
import jax.numpy as jnp
from jax.experimental import pallas as pl
from jax.experimental.pallas import tpu as pltpu


def _fusion_kernel(f1_ref, f2_ref, w1_ref, b1_ref, w2_ref, b2_ref, out_ref):
    """One row tile: tm = tg * view_num input rows -> tg view-averaged rows."""
    tm = f1_ref.shape[0]
    tg = out_ref.shape[0]
    view_num = tm // tg
    mm_dtype = w1_ref.dtype              # matmul input dtype (f32 or bf16)

    w1 = w1_ref[...]
    b1 = b1_ref[...]                     # (1, C) f32, hoisted out of the view loop

    x_sum = None
    h_sum = None
    # Static (unrolled) loop over views.  A strided sublane read pulls view v's
    # row of every group in the tile straight from the streamed VMEM blocks, so
    # the per-group view mean is a cheap VPU add (no dense averaging matmul).
    for v in range(view_num):
        rows = pl.ds(v, tg, stride=view_num)
        x_v = (f1_ref[rows, :].astype(jnp.float32)
               + f2_ref[rows, :].astype(jnp.float32))             # (tg, C)
        h_v = jnp.dot(x_v.astype(mm_dtype), w1,
                      preferred_element_type=jnp.float32) + b1    # 1x1 conv #1
        h_v = jnp.maximum(h_v, jnp.float32(0.0))                  # ReLU (VPU)
        x_sum = x_v if x_sum is None else x_sum + x_v
        h_sum = h_v if h_sum is None else h_sum + h_v

    # mean_v(x_v + BN(ReLU(conv1 x_v)) @ W2 + b2)
    #   = (sum_v x_v + (sum_v ReLU(conv1 x_v)) @ W2_bn) / V + b2_bn
    r = jnp.dot(h_sum.astype(mm_dtype), w2_ref[...],
                preferred_element_type=jnp.float32)               # 1x1 conv #2 on (tg, C)
    out = (x_sum + r) * jnp.float32(1.0 / view_num) + b2_ref[...]
    out_ref[...] = out.astype(out_ref.dtype)


def _sublane_multiple(*dtypes):
    """Second-minor block multiple required by the dtypes of streamed blocks."""
    m = 8
    for dt in dtypes:
        m = max(m, 32 // max(1, np.dtype(dt).itemsize))   # f32->8, bf16->16, int8->32
    return m


def _choose_group_tile(chunk, view_num, sub, target_rows):
    """Pick (groups_per_tile, padded_chunk).

    - groups_per_tile * view_num ~= target_rows (HBM-streaming sweet spot),
    - groups_per_tile is a multiple of `sub` unless a single tile covers a tiny
      problem (full-array blocks are exempt from the divisibility rule),
    - >= 2 tiles whenever the problem spans more than one sublane block, so the
      "parallel" grid axis has work for v7x's two TensorCores and pipelining.
    """
    if chunk <= sub:
        return chunk, chunk                                # one full-array tile
    cap = max(sub, (max(target_rows // view_num, sub) // sub) * sub)
    half = -(-chunk // 2)                                  # ceil(chunk / 2)
    tg = min(cap, ((half + sub - 1) // sub) * sub)         # >= 2 tiles, sub-aligned
    padded_chunk = -(-chunk // tg) * tg                    # whole number of tiles
    return tg, padded_chunk


def multiview_feature_fusion(features_1, features_2, pids, params, view_num, *,
                             bn_eps=1e-5, group_tile=None, target_rows=2048,
                             matmul_dtype=None):
    """features_1/2: (B, C); pids: (B,). Returns (fused (B//V, C), fused_pids)."""
    B, C = features_1.shape
    assert features_2.shape == (B, C)
    assert B % view_num == 0
    chunk = B // view_num
    out_dtype = features_1.dtype
    mm_dtype = jnp.float32 if matmul_dtype is None else matmul_dtype

    # --- Parameter prep (tiny, O(C^2)) --------------------------------------
    bn_scale = params["bn_gamma"] / jnp.sqrt(params["bn_var"] + bn_eps)      # (C,)
    bn_shift = params["bn_beta"] - params["bn_mean"] * bn_scale              # (C,)
    w1t = params["w1"].T.astype(mm_dtype)                                    # (C_in, C_out)
    w2t = params["w2"].T.astype(jnp.float32)
    # Fold BN (scale/shift between ReLU and the linear conv2) into conv2:
    w2f = (bn_scale[:, None].astype(jnp.float32) * w2t).astype(mm_dtype)     # (C, C)
    b2f = (params["b2"].astype(jnp.float32)
           + bn_shift.astype(jnp.float32) @ w2t).reshape(1, C).astype(jnp.float32)
    b1 = params["b1"].reshape(1, C).astype(jnp.float32)

    # --- Tiling --------------------------------------------------------------
    sub = _sublane_multiple(features_1.dtype, features_2.dtype, out_dtype)
    if group_tile is not None:
        tg = int(group_tile)
        padded_chunk = -(-chunk // tg) * tg
        assert tg % sub == 0 or padded_chunk == tg, (
            f"group_tile={tg} must be a multiple of {sub} or cover the batch")
    else:
        tg, padded_chunk = _choose_group_tile(chunk, view_num, sub, target_rows)
    tm = tg * view_num
    num_tiles = padded_chunk // tg

    # Pad awkward chunk sizes up to a whole number of tiles instead of falling
    # back to one giant tile (keeps double-buffering + megacore sharding); the
    # padded groups are sliced off the output below.
    if padded_chunk != chunk:
        pad_rows = (padded_chunk - chunk) * view_num
        features_1 = jnp.pad(features_1, ((0, pad_rows), (0, 0)))
        features_2 = jnp.pad(features_2, ((0, pad_rows), (0, 0)))

    row_spec = pl.BlockSpec((tm, C), lambda i: (i, 0))
    mat_spec = pl.BlockSpec((C, C), lambda i: (0, 0))      # VMEM-resident weights
    vec_spec = pl.BlockSpec((1, C), lambda i: (0, 0))
    out_spec = pl.BlockSpec((tg, C), lambda i: (i, 0))

    # Actual footprint at tm=2048, f32 is ~8 MiB (2 inputs x 2 buffers x tm*C*4
    # plus resident weights and f32 temporaries); 32 MiB is comfortable headroom
    # on every generation (v7x physical VMEM is 64 MiB).
    # TODO(synk): on v5e, pipeline_mode=pl.Buffered(3) on the two row specs can
    # further hide the longer per-tile DMA at its lower HBM bandwidth.
    fused = pl.pallas_call(
        _fusion_kernel,
        out_shape=jax.ShapeDtypeStruct((padded_chunk, C), out_dtype),
        grid=(num_tiles,),
        in_specs=[row_spec, row_spec, mat_spec, vec_spec, mat_spec, vec_spec],
        out_specs=out_spec,
        compiler_params=pltpu.CompilerParams(
            dimension_semantics=("parallel",),
            vmem_limit_bytes=32 * 1024 * 1024),
    )(features_1, features_2, w1t, b1, w2f, b2f)

    if padded_chunk != chunk:
        fused = fused[:chunk]

    fused_pids = pids.reshape(chunk, view_num)[:, 0]       # index glue, no compute
    return fused, fused_pids


def multiview_feature_fusion_ref(features_1, features_2, pids, params, view_num,
                                 bn_eps=1e-5):
    """Pure-JAX reference mirroring the PyTorch forward (inference-mode BN)."""
    B, C = features_1.shape
    chunk = B // view_num
    x = features_1 + features_2
    h = x @ params["w1"].T + params["b1"]
    h = jnp.maximum(h, 0.0)
    h = ((h - params["bn_mean"]) / jnp.sqrt(params["bn_var"] + bn_eps)
         * params["bn_gamma"] + params["bn_beta"])
    r = h @ params["w2"].T + params["b2"]
    fused = (x + r).reshape(chunk, view_num, C).mean(axis=1)
    fused_pids = pids.reshape(chunk, view_num)[:, 0]
    return fused, fused_pids


if __name__ == "__main__":
    # Small shapes consistent with the module: view_num=2, 4 view-groups
    # -> B=8 rows; input_dim == out_dim == 128 (Residual requires equal dims).
    view_num = 2
    chunk = 4
    B = chunk * view_num
    C = 128

    key = jax.random.PRNGKey(0)
    k1, k2, k3, k4 = jax.random.split(key, 4)
    features_1 = jax.random.normal(k1, (B, C), jnp.float32)
    features_2 = jax.random.normal(k2, (B, C), jnp.float32)
    pids = jnp.arange(1, B + 1, dtype=jnp.int32)

    fan_in_scale = (2.0 / C) ** 0.5          # kaiming_normal_(fan_in)
    params = dict(
        w1=jax.random.normal(k3, (C, C), jnp.float32) * fan_in_scale,
        b1=jnp.zeros((C,), jnp.float32),
        w2=jax.random.normal(k4, (C, C), jnp.float32) * fan_in_scale,
        b2=jnp.zeros((C,), jnp.float32),
        bn_gamma=jnp.ones((C,), jnp.float32),
        bn_beta=jnp.zeros((C,), jnp.float32),
        bn_mean=jnp.zeros((C,), jnp.float32),
        bn_var=jnp.ones((C,), jnp.float32),
    )

    ref_fused, ref_pids = multiview_feature_fusion_ref(
        features_1, features_2, pids, params, view_num)

    # 1) f32 matmul path.
    fused, fused_pids = multiview_feature_fusion(
        features_1, features_2, pids, params, view_num)
    fused = jax.block_until_ready(fused)
    assert fused.shape == (chunk, C)
    assert jnp.allclose(fused, ref_fused, rtol=1e-4, atol=1e-4), (
        float(jnp.max(jnp.abs(fused - ref_fused))))
    assert jnp.array_equal(fused_pids, ref_pids)

    # 2) bf16 MXU fast path (v6e/v7x); accumulation stays f32.
    fused_bf16, _ = multiview_feature_fusion(
        features_1, features_2, pids, params, view_num,
        matmul_dtype=jnp.bfloat16)
    fused_bf16 = jax.block_until_ready(fused_bf16)
    assert jnp.allclose(fused_bf16, ref_fused, rtol=5e-2, atol=2.5e-1), (
        float(jnp.max(jnp.abs(fused_bf16 - ref_fused))))

    # 3) Awkward chunk (padding path): 3 views, 9 groups -> 2 padded tiles.
    vn3, chunk3 = 3, 9
    B3 = vn3 * chunk3
    kk = jax.random.split(jax.random.PRNGKey(1), 2)
    f1b = jax.random.normal(kk[0], (B3, C), jnp.float32)
    f2b = jax.random.normal(kk[1], (B3, C), jnp.float32)
    pids3 = jnp.arange(1, B3 + 1, dtype=jnp.int32)
    fused3, pids3_out = multiview_feature_fusion(f1b, f2b, pids3, params, vn3)
    fused3 = jax.block_until_ready(fused3)
    ref3, ref_pids3 = multiview_feature_fusion_ref(f1b, f2b, pids3, params, vn3)
    assert fused3.shape == (chunk3, C)
    assert jnp.allclose(fused3, ref3, rtol=1e-4, atol=1e-4), (
        float(jnp.max(jnp.abs(fused3 - ref3))))
    assert jnp.array_equal(pids3_out, ref_pids3)

    print("KERNEL_OK")
</pallas_src>

<mosaic_0001>
module attributes {stable_mosaic.version = 11 : i64} {
  func.func @_fusion_kernel(%arg0: i32, %arg1: memref<8x128xf32, #tpu.memory_space<vmem>>, %arg2: memref<8x128xf32, #tpu.memory_space<vmem>>, %arg3: memref<128x128xf32, #tpu.memory_space<vmem>>, %arg4: memref<1x128xf32, #tpu.memory_space<vmem>>, %arg5: memref<128x128xf32, #tpu.memory_space<vmem>>, %arg6: memref<1x128xf32, #tpu.memory_space<vmem>>, %arg7: memref<4x128xf32, #tpu.memory_space<vmem>>) attributes {dimension_semantics = [#tpu.dimension_semantics<parallel>], iteration_bounds = array<i64: 1>, scalar_prefetch = 0 : i64, scratch_operands = 0 : i64, tpu.core_type = #tpu.core_type<tc>, window_params = [{transform_indices = @transform_0, window_bounds = array<i64: 8, 128>}, {transform_indices = @transform_1, window_bounds = array<i64: 8, 128>}, {pipeline_mode = #tpu.pipeline_mode<synchronous>, transform_indices = @transform_2, window_bounds = array<i64: 128, 128>}, {pipeline_mode = #tpu.pipeline_mode<synchronous>, transform_indices = @transform_3, window_bounds = array<i64: 1, 128>}, {pipeline_mode = #tpu.pipeline_mode<synchronous>, transform_indices = @transform_4, window_bounds = array<i64: 128, 128>}, {pipeline_mode = #tpu.pipeline_mode<synchronous>, transform_indices = @transform_5, window_bounds = array<i64: 1, 128>}, {transform_indices = @transform_6, window_bounds = array<i64: 4, 128>}]} {
    %c0 = arith.constant 0 : index
    %c0_0 = arith.constant 0 : index
    %0 = vector.load %arg3[%c0, %c0_0] : memref<128x128xf32, #tpu.memory_space<vmem>>, vector<128x128xf32>
    %c0_1 = arith.constant 0 : index
    %c0_2 = arith.constant 0 : index
    %1 = vector.load %arg4[%c0_1, %c0_2] : memref<1x128xf32, #tpu.memory_space<vmem>>, vector<1x128xf32>
    %c0_3 = arith.constant 0 : index
    %c0_4 = arith.constant 0 : index
    %2 = tpu.strided_load %arg1[%c0_3, %c0_4] {strides = array<i32: 2, 1>} : memref<8x128xf32, #tpu.memory_space<vmem>>, vector<4x128xf32>
    %c0_5 = arith.constant 0 : index
    %c0_6 = arith.constant 0 : index
    %3 = tpu.strided_load %arg2[%c0_5, %c0_6] {strides = array<i32: 2, 1>} : memref<8x128xf32, #tpu.memory_space<vmem>>, vector<4x128xf32>
    %4 = arith.addf %2, %3 : vector<4x128xf32>
    %cst = arith.constant dense<0.000000e+00> : vector<4x128xf32>
    %5 = tpu.matmul %4, %0, %cst {dimension_numbers = #tpu.dot_dimension_numbers<[1], [0], [0], [1], [0, 0, 1, 1], [], []>} : vector<4x128xf32>, vector<128x128xf32>, vector<4x128xf32> -> vector<4x128xf32>
    %6 = vector.broadcast %1 : vector<1x128xf32> to vector<4x128xf32>
    %7 = arith.addf %5, %6 : vector<4x128xf32>
    %cst_7 = arith.constant 0.000000e+00 : f32
    %8 = vector.broadcast %cst_7 : f32 to vector<4x128xf32>
    %9 = arith.maximumf %7, %8 : vector<4x128xf32>
    %c1 = arith.constant 1 : index
    %c0_8 = arith.constant 0 : index
    %10 = tpu.strided_load %arg1[%c1, %c0_8] {strides = array<i32: 2, 1>} : memref<8x128xf32, #tpu.memory_space<vmem>>, vector<4x128xf32>
    %c1_9 = arith.constant 1 : index
    %c0_10 = arith.constant 0 : index
    %11 = tpu.strided_load %arg2[%c1_9, %c0_10] {strides = array<i32: 2, 1>} : memref<8x128xf32, #tpu.memory_space<vmem>>, vector<4x128xf32>
    %12 = arith.addf %10, %11 : vector<4x128xf32>
    %cst_11 = arith.constant dense<0.000000e+00> : vector<4x128xf32>
    %13 = tpu.matmul %12, %0, %cst_11 {dimension_numbers = #tpu.dot_dimension_numbers<[1], [0], [0], [1], [0, 0, 1, 1], [], []>} : vector<4x128xf32>, vector<128x128xf32>, vector<4x128xf32> -> vector<4x128xf32>
    %14 = vector.broadcast %1 : vector<1x128xf32> to vector<4x128xf32>
    %15 = arith.addf %13, %14 : vector<4x128xf32>
    %cst_12 = arith.constant 0.000000e+00 : f32
    %16 = vector.broadcast %cst_12 : f32 to vector<4x128xf32>
    %17 = arith.maximumf %15, %16 : vector<4x128xf32>
    %18 = arith.addf %4, %12 : vector<4x128xf32>
    %19 = arith.addf %9, %17 : vector<4x128xf32>
    %c0_13 = arith.constant 0 : index
    %c0_14 = arith.constant 0 : index
    %20 = vector.load %arg5[%c0_13, %c0_14] : memref<128x128xf32, #tpu.memory_space<vmem>>, vector<128x128xf32>
    %cst_15 = arith.constant dense<0.000000e+00> : vector<4x128xf32>
    %21 = tpu.matmul %19, %20, %cst_15 {dimension_numbers = #tpu.dot_dimension_numbers<[1], [0], [0], [1], [0, 0, 1, 1], [], []>} : vector<4x128xf32>, vector<128x128xf32>, vector<4x128xf32> -> vector<4x128xf32>
    %22 = arith.addf %18, %21 : vector<4x128xf32>
    %cst_16 = arith.constant 5.000000e-01 : f32
    %23 = vector.broadcast %cst_16 : f32 to vector<4x128xf32>
    %24 = arith.mulf %22, %23 : vector<4x128xf32>
    %c0_17 = arith.constant 0 : index
    %c0_18 = arith.constant 0 : index
    %25 = vector.load %arg6[%c0_17, %c0_18] : memref<1x128xf32, #tpu.memory_space<vmem>>, vector<1x128xf32>
    %26 = vector.broadcast %25 : vector<1x128xf32> to vector<4x128xf32>
    %27 = arith.addf %24, %26 : vector<4x128xf32>
    %c0_19 = arith.constant 0 : index
    %c0_20 = arith.constant 0 : index
    %28 = vector.load %arg7[%c0_19, %c0_20] : memref<4x128xf32, #tpu.memory_space<vmem>>, vector<4x128xf32>
    tpu.vector_store %arg7[%c0_19, %c0_20], %27 {strides = array<i32>} : memref<4x128xf32, #tpu.memory_space<vmem>>, vector<4x128xf32>,
    return
  }
  func.func @transform_0(%arg0: i32) -> (i32, i32) {
    %c0_i32 = arith.constant 0 : i32
    %c0_i32_0 = arith.constant 0 : i32
    return %arg0, %c0_i32 : i32, i32
  }
  func.func @transform_1(%arg0: i32) -> (i32, i32) {
    %c0_i32 = arith.constant 0 : i32
    %c0_i32_0 = arith.constant 0 : i32
    return %arg0, %c0_i32 : i32, i32
  }
  func.func @transform_2(%arg0: i32) -> (i32, i32) {
    %c0_i32 = arith.constant 0 : i32
    %c0_i32_0 = arith.constant 0 : i32
    %c0_i32_1 = arith.constant 0 : i32
    return %c0_i32, %c0_i32_0 : i32, i32
  }
  func.func @transform_3(%arg0: i32) -> (i32, i32) {
    %c0_i32 = arith.constant 0 : i32
    %c0_i32_0 = arith.constant 0 : i32
    %c0_i32_1 = arith.constant 0 : i32
    return %c0_i32, %c0_i32_0 : i32, i32
  }
  func.func @transform_4(%arg0: i32) -> (i32, i32) {
    %c0_i32 = arith.constant 0 : i32
    %c0_i32_0 = arith.constant 0 : i32
    %c0_i32_1 = arith.constant 0 : i32
    return %c0_i32, %c0_i32_0 : i32, i32
  }
  func.func @transform_5(%arg0: i32) -> (i32, i32) {
    %c0_i32 = arith.constant 0 : i32
    %c0_i32_0 = arith.constant 0 : i32
    %c0_i32_1 = arith.constant 0 : i32
    return %c0_i32, %c0_i32_0 : i32, i32
  }
  func.func @transform_6(%arg0: i32) -> (i32, i32) {
    %c0_i32 = arith.constant 0 : i32
    %c0_i32_0 = arith.constant 0 : i32
    return %arg0, %c0_i32 : i32, i32
  }
}

</mosaic_0001>

<llo_original>
// kernel: tpu_custom_call.1
$region0: #{tpu_custom_call.1}
  #allocation0 [shape = 'u32[]', space=smem, size = 0x4, offset = 0x4, fixed_abs, tag = 'smem constant byte address 0x4 - core index']
  #allocation1 [shape = 'u32[144,128]{1,0:T(1,128)}', space=vmem, size = 0x12000, scoped, tag = 'internal scratch']
  %s0 = inlined_call_operand.hbm [shape: f32[8,128], index: 0, kind: input, shape index: {}]
  %s1 = inlined_call_operand.hbm [shape: f32[8,128], index: 1, kind: input, shape index: {}]
  %s2 = inlined_call_operand.hbm [shape: f32[128,128], index: 2, kind: input, shape index: {}]
  %s3 = inlined_call_operand.vmem [shape: f32[1,128], index: 3, kind: input, shape index: {}]
  %s4 = inlined_call_operand.hbm [shape: f32[128,128], index: 4, kind: input, shape index: {}]
  %s5 = inlined_call_operand.vmem [shape: f32[1,128], index: 5, kind: input, shape index: {}]
  %s6 = inlined_call_operand.hbm [shape: f32[4,128], index: 6, kind: output, shape index: {}]
  %s7 = sld [smem:[#allocation0]]
  $region50: #{tpu_custom_call.1} parent=0
    _
  %s9 = ssub.s32 1, %s7
  %s10 = scalar_select 0, %s9, %s7
  $region1: #{tpu_custom_call.1} parent=0
    #allocation2 [shape = 'u8[4096]{0}', space=vmem, size = 0x1000, scoped, tag = 'input window, operand 0, single buffered']
    #allocation3 [shape = 's32[1]{0}', space=sflag, size = 0x4, scoped, tag = 'scoped memory for tpu_custom_call.1']
    #allocation4 [shape = 's32[1]{0}', space=sflag, size = 0x4, scoped, tag = 'scoped memory for tpu_custom_call.1']
    #allocation5 [shape = 'u8[4096]{0}', space=vmem, size = 0x1000, scoped, tag = 'input window, operand 1, single buffered']
    #allocation6 [shape = 's32[1]{0}', space=sflag, size = 0x4, scoped, tag = 'scoped memory for tpu_custom_call.1']
    #allocation7 [shape = 'u8[65536]{0}', space=vmem, size = 0x10000, scoped, tag = 'input window, operand 2, single buffered']
    #allocation8 [shape = 'u8[65536]{0}', space=vmem, size = 0x10000, scoped, tag = 'input window, operand 4, single buffered']
    #allocation9 [shape = 's32[1]{0}', space=sflag, size = 0x4, scoped, tag = 'scoped memory for tpu_custom_call.1']
    #allocation10 [shape = 'u8[2048]{0}', space=vmem, size = 0x800, scoped, tag = 'output window, operand 0, single buffered']
    %11 = vsyncpa [#allocation3], 0
    %12 = vsyncpa [#allocation6], 0
    %13 = vsyncpa [#allocation9], 0
    %14 = vsyncpa [#allocation4], 0
    // Predicated region
    $region2: #{tpu_custom_call.1} parent=1 // pred_check
      _
    $region3: #{tpu_custom_call.1} parent=1 // pred_check_branch
      %16 = sbr.rel (0) target = $region5
    $region4: #{tpu_custom_call.1} parent=1 // pred_region
      %s18 = ssub.s32 128, 128
      %19 = vsyncadd [#allocation3], %s18
      %s21 = sshll.u32 [#allocation2], 4
      %s22 = int_to_ptr.vmem [resolvable:$true] %s21
      %24 = dma.hbm_to_vmem [thread:$0]  %s0, 128, %s22, [#allocation3]
    $region5: #{tpu_custom_call.1} parent=1 // pred_fallthru
      _
    // Predicated region
    $region6: #{tpu_custom_call.1} parent=1 // pred_check
      _
    $region7: #{tpu_custom_call.1} parent=1 // pred_check_branch
      %26 = sbr.rel (0) target = $region9
    $region8: #{tpu_custom_call.1} parent=1 // pred_region
      %s28 = ssub.s32 128, 128
      %29 = vsyncadd [#allocation6], %s28
      %s31 = sshll.u32 [#allocation5], 4
      %s32 = int_to_ptr.vmem [resolvable:$true] %s31
      %34 = dma.hbm_to_vmem [thread:$0]  %s1, 128, %s32, [#allocation6]
    $region9: #{tpu_custom_call.1} parent=1 // pred_fallthru
      _
    // Predicated region
    $region10: #{tpu_custom_call.1} parent=1 // pred_check
      _
    $region11: #{tpu_custom_call.1} parent=1 // pred_check_branch
      %36 = sbr.rel (0) target = $region13
    $region12: #{tpu_custom_call.1} parent=1 // pred_region
      %s38 = ssub.s32 2048, 2048
      %39 = vsyncadd [#allocation6], %s38
      %s40 = sshll.u32 [#allocation7], 4
      %s41 = int_to_ptr.vmem [resolvable:$true] %s40
      %46 = dma.hbm_to_vmem [thread:$0]  %s2, 2048, %s41, [#allocation6], 128, 128, 8
    $region13: #{tpu_custom_call.1} parent=1 // pred_fallthru
      _
    // Predicated region
    $region14: #{tpu_custom_call.1} parent=1 // pred_check
      _
    $region15: #{tpu_custom_call.1} parent=1 // pred_check_branch
      %48 = sbr.rel (0) target = $region17
    $region16: #{tpu_custom_call.1} parent=1 // pred_region
      _
    $region17: #{tpu_custom_call.1} parent=1 // pred_fallthru
      _
    // Predicated region
    $region18: #{tpu_custom_call.1} parent=1 // pred_check
      _
    $region19: #{tpu_custom_call.1} parent=1 // pred_check_branch
      %50 = sbr.rel (0) target = $region21
    $region20: #{tpu_custom_call.1} parent=1 // pred_region
      %s52 = ssub.s32 2048, 2048
      %53 = vsyncadd [#allocation9], %s52
      %s54 = sshll.u32 [#allocation8], 4
      %s55 = int_to_ptr.vmem [resolvable:$true] %s54
      %60 = dma.hbm_to_vmem [thread:$0]  %s4, 2048, %s55, [#allocation9], 128, 128, 8
    $region21: #{tpu_custom_call.1} parent=1 // pred_fallthru
      _
    // Predicated region
    $region22: #{tpu_custom_call.1} parent=1 // pred_check
      _
    $region23: #{tpu_custom_call.1} parent=1 // pred_check_branch
      %62 = sbr.rel (0) target = $region25
    $region24: #{tpu_custom_call.1} parent=1 // pred_region
      _
    $region25: #{tpu_custom_call.1} parent=1 // pred_fallthru
      _
    // Predicated region
    $region26: #{tpu_custom_call.1} parent=1 // pred_check
      _
    $region27: #{tpu_custom_call.1} parent=1 // pred_check_branch
      %64 = sbr.rel (0) target = $region29
    $region28: #{tpu_custom_call.1} parent=1 // pred_region
      %65 = dma.done [#allocation3], 128
    $region29: #{tpu_custom_call.1} parent=1 // pred_fallthru
      _
    // Predicated region
    $region30: #{tpu_custom_call.1} parent=1 // pred_check
      _
    $region31: #{tpu_custom_call.1} parent=1 // pred_check_branch
      %67 = sbr.rel (0) target = $region33
    $region32: #{tpu_custom_call.1} parent=1 // pred_region
      %68 = dma.done [#allocation6], 128
    $region33: #{tpu_custom_call.1} parent=1 // pred_fallthru
      _
    // Predicated region
    $region34: #{tpu_custom_call.1} parent=1 // pred_check
      _
    $region35: #{tpu_custom_call.1} parent=1 // pred_check_branch
      %70 = sbr.rel (0) target = $region37
    $region36: #{tpu_custom_call.1} parent=1 // pred_region
      %71 = dma.done [#allocation6], 2048
    $region37: #{tpu_custom_call.1} parent=1 // pred_fallthru
      _
    // Predicated region
    $region38: #{tpu_custom_call.1} parent=1 // pred_check
      _
    $region39: #{tpu_custom_call.1} parent=1 // pred_check_branch
      %73 = sbr.rel (0) target = $region41
    $region40: #{tpu_custom_call.1} parent=1 // pred_region
      %74 = dma.done [#allocation9], 2048
    $region41: #{tpu_custom_call.1} parent=1 // pred_fallthru
      _
    %v75 = vld [vmem:[#allocation7] sm:$0xff]
    %v76 = vld [vmem:[#allocation7 + $0x8] sm:$0xff]
    %v77 = vld [vmem:[#allocation7 + $0x10] sm:$0xff]
    %v78 = vld [vmem:[#allocation7 + $0x18] sm:$0xff]
    %v79 = vld [vmem:[#allocation7 + $0x20] sm:$0xff]
    %v80 = vld [vmem:[#allocation7 + $0x28] sm:$0xff]
    %v81 = vld [vmem:[#allocation7 + $0x30] sm:$0xff]
    %v82 = vld [vmem:[#allocation7 + $0x38] sm:$0xff]
    %v83 = vld [vmem:[#allocation7 + $0x40] sm:$0xff]
    %v84 = vld [vmem:[#allocation7 + $0x48] sm:$0xff]
    %v85 = vld [vmem:[#allocation7 + $0x50] sm:$0xff]
    %v86 = vld [vmem:[#allocation7 + $0x58] sm:$0xff]
    %v87 = vld [vmem:[#allocation7 + $0x60] sm:$0xff]
    %v88 = vld [vmem:[#allocation7 + $0x68] sm:$0xff]
    %v89 = vld [vmem:[#allocation7 + $0x70] sm:$0xff]
    %v90 = vld [vmem:[#allocation7 + $0x78] sm:$0xff]
    %v91 = vld [vmem:[%s3] sm:$0x1]
    %v92 = vld [vmem:[#allocation2] ss:$2 sm:$0xf]
    %v93 = vld [vmem:[#allocation5] ss:$2 sm:$0xf]
    %v94 = vadd.f32 %v92, %v93
    %v96 = vlaneseq
    %v97 = vshrl.u32 %v96, 7
    %v98 = vsub.s32 0, %v97
    %v99 = vrot.slane %v91, %v98
    %101 = vmatprep.subr.mxu0 0.0
    %102 = vmatpush1.msra.mxu0 %v75
    %103 = vmatprep.subr.mxu0 0.0
    %104 = vmatpush1.msra.mxu0 %v76
    %105 = vmatprep.subr.mxu0 0.0
    %106 = vmatpush1.msra.mxu0 %v77
    %107 = vmatprep.subr.mxu0 0.0
    %108 = vmatpush1.msra.mxu0 %v78
    %109 = vmatprep.subr.mxu0 0.0
    %110 = vmatpush1.msra.mxu0 %v79
    %111 = vmatprep.subr.mxu0 0.0
    %112 = vmatpush1.msra.mxu0 %v80
    %113 = vmatprep.subr.mxu0 0.0
    %114 = vmatpush1.msra.mxu0 %v81
    %115 = vmatprep.subr.mxu0 0.0
    %116 = vmatpush1.msra.mxu0 %v82
    %117 = vmatprep.subr.mxu0 0.0
    %118 = vmatpush1.msra.mxu0 %v83
    %119 = vmatprep.subr.mxu0 0.0
    %120 = vmatpush1.msra.mxu0 %v84
    %121 = vmatprep.subr.mxu0 0.0
    %122 = vmatpush1.msra.mxu0 %v85
    %123 = vmatprep.subr.mxu0 0.0
    %124 = vmatpush1.msra.mxu0 %v86
    %125 = vmatprep.subr.mxu0 0.0
    %126 = vmatpush1.msra.mxu0 %v87
    %127 = vmatprep.subr.mxu0 0.0
    %128 = vmatpush1.msra.mxu0 %v88
    %129 = vmatprep.subr.mxu0 0.0
    %130 = vmatpush1.msra.mxu0 %v89
    %131 = vmatprep.subr.mxu0 0.0
    %132 = vmatpush1.msra.mxu0 %v90
    %133 = vmatprep.subr.mxu0 0.0
    %134 = vmatpush1.msra.mxu0 0.0
    %135 = vmatprep.subr.mxu0 0.0
    %136 = vmatpush1.msra.mxu0 0.0
    %137 = vmatprep.subr.mxu0 0.0
    %138 = vmatpush1.msra.mxu0 0.0
    %139 = vmatprep.subr.mxu0 0.0
    %140 = vmatpush1.msra.mxu0 0.0
    %141 = vmatprep.subr.mxu0 0.0
    %142 = vmatpush1.msra.mxu0 0.0
    %143 = vmatprep.subr.mxu0 0.0
    %144 = vmatpush1.msra.mxu0 0.0
    %145 = vmatprep.subr.mxu0 0.0
    %146 = vmatpush1.msra.mxu0 0.0
    %147 = vmatprep.subr.mxu0 0.0
    %148 = vmatpush1.msra.mxu0 0.0
    %149 = vmatprep.subr.mxu0 0.0
    %150 = vmatpush1.msra.mxu0 0.0
    %151 = vmatprep.subr.mxu0 0.0
    %152 = vmatpush1.msra.mxu0 0.0
    %153 = vmatprep.subr.mxu0 0.0
    %154 = vmatpush1.msra.mxu0 0.0
    %155 = vmatprep.subr.mxu0 0.0
    %156 = vmatpush1.msra.mxu0 0.0
    %157 = vmatprep.subr.mxu0 0.0
    %158 = vmatpush1.msra.mxu0 0.0
    %159 = vmatprep.subr.mxu0 0.0
    %160 = vmatpush1.msra.mxu0 0.0
    %161 = vmatprep.subr.mxu0 0.0
    %162 = vmatpush1.msra.mxu0 0.0
    %163 = vmatprep.subr.mxu0 0.0
    %164 = vmatpush1.msra.mxu0 0.0
    %165 = vmatprep.mubr.f32.mxu0 0.0
    %166 = vmatmul.mubr.f32.gmra.mrb[0].mxu0 %v94
    %v167 = vpop.f32.mrb[0].mxu0
    %v168 = vadd.f32 %v99, %v167
    %v169 = vpop.f32.mrb[0].mxu0
    %170 = vdwg.mxu0
    %v171 = vmax.f32 %v168, 0.0
    %s172 = scalar_lea.vmem [#allocation2], 1
    %v173 = vld [vmem:[%s172] ss:$2 sm:$0xf]
    %s174 = scalar_lea.vmem [#allocation5], 1
    %v175 = vld [vmem:[%s174] ss:$2 sm:$0xf]
    %v176 = vadd.f32 %v173, %v175
    %177 = vmatprep.subr.mxu0 0.0
    %178 = vmatpush1.msra.mxu0 %v75
    %179 = vmatprep.subr.mxu0 0.0
    %180 = vmatpush1.msra.mxu0 %v76
    %181 = vmatprep.subr.mxu0 0.0
    %182 = vmatpush1.msra.mxu0 %v77
    %183 = vmatprep.subr.mxu0 0.0
    %184 = vmatpush1.msra.mxu0 %v78
    %185 = vmatprep.subr.mxu0 0.0
    %186 = vmatpush1.msra.mxu0 %v79
    %187 = vmatprep.subr.mxu0 0.0
    %188 = vmatpush1.msra.mxu0 %v80
    %189 = vmatprep.subr.mxu0 0.0
    %190 = vmatpush1.msra.mxu0 %v81
    %191 = vmatprep.subr.mxu0 0.0
    %192 = vmatpush1.msra.mxu0 %v82
    %193 = vmatprep.subr.mxu0 0.0
    %194 = vmatpush1.msra.mxu0 %v83
    %195 = vmatprep.subr.mxu0 0.0
    %196 = vmatpush1.msra.mxu0 %v84
    %197 = vmatprep.subr.mxu0 0.0
    %198 = vmatpush1.msra.mxu0 %v85
    %199 = vmatprep.subr.mxu0 0.0
    %200 = vmatpush1.msra.mxu0 %v86
    %201 = vmatprep.subr.mxu0 0.0
    %202 = vmatpush1.msra.mxu0 %v87
    %203 = vmatprep.subr.mxu0 0.0
    %204 = vmatpush1.msra.mxu0 %v88
    %205 = vmatprep.subr.mxu0 0.0
    %206 = vmatpush1.msra.mxu0 %v89
    %207 = vmatprep.subr.mxu0 0.0
    %208 = vmatpush1.msra.mxu0 %v90
    %209 = vmatprep.subr.mxu0 0.0
    %210 = vmatpush1.msra.mxu0 0.0
    %211 = vmatprep.subr.mxu0 0.0
    %212 = vmatpush1.msra.mxu0 0.0
    %213 = vmatprep.subr.mxu0 0.0
    %214 = vmatpush1.msra.mxu0 0.0
    %215 = vmatprep.subr.mxu0 0.0
    %216 = vmatpush1.msra.mxu0 0.0
    %217 = vmatprep.subr.mxu0 0.0
    %218 = vmatpush1.msra.mxu0 0.0
    %219 = vmatprep.subr.mxu0 0.0
    %220 = vmatpush1.msra.mxu0 0.0
    %221 = vmatprep.subr.mxu0 0.0
    %222 = vmatpush1.msra.mxu0 0.0
    %223 = vmatprep.subr.mxu0 0.0
    %224 = vmatpush1.msra.mxu0 0.0
    %225 = vmatprep.subr.mxu0 0.0
    %226 = vmatpush1.msra.mxu0 0.0
    %227 = vmatprep.subr.mxu0 0.0
    %228 = vmatpush1.msra.mxu0 0.0
    %229 = vmatprep.subr.mxu0 0.0
    %230 = vmatpush1.msra.mxu0 0.0
    %231 = vmatprep.subr.mxu0 0.0
    %232 = vmatpush1.msra.mxu0 0.0
    %233 = vmatprep.subr.mxu0 0.0
    %234 = vmatpush1.msra.mxu0 0.0
    %235 = vmatprep.subr.mxu0 0.0
    %236 = vmatpush1.msra.mxu0 0.0
    %237 = vmatprep.subr.mxu0 0.0
    %238 = vmatpush1.msra.mxu0 0.0
    %239 = vmatprep.subr.mxu0 0.0
    %240 = vmatpush1.msra.mxu0 0.0
    %241 = vmatprep.mubr.f32.mxu0 0.0
    %242 = vmatmul.mubr.f32.gmra.mrb[0].mxu0 %v176
    %v243 = vpop.f32.mrb[0].mxu0
    %v244 = vadd.f32 %v99, %v243
    %v245 = vpop.f32.mrb[0].mxu0
    %246 = vdwg.mxu0
    %v247 = vmax.f32 %v244, 0.0
    %v248 = vadd.f32 %v94, %v176
    %v249 = vadd.f32 %v171, %v247
    %v250 = vld [vmem:[#allocation8] sm:$0xff]
    %v251 = vld [vmem:[#allocation8 + $0x8] sm:$0xff]
    %v252 = vld [vmem:[#allocation8 + $0x10] sm:$0xff]
    %v253 = vld [vmem:[#allocation8 + $0x18] sm:$0xff]
    %v254 = vld [vmem:[#allocation8 + $0x20] sm:$0xff]
    %v255 = vld [vmem:[#allocation8 + $0x28] sm:$0xff]
    %v256 = vld [vmem:[#allocation8 + $0x30] sm:$0xff]
    %v257 = vld [vmem:[#allocation8 + $0x38] sm:$0xff]
    %v258 = vld [vmem:[#allocation8 + $0x40] sm:$0xff]
    %v259 = vld [vmem:[#allocation8 + $0x48] sm:$0xff]
    %v260 = vld [vmem:[#allocation8 + $0x50] sm:$0xff]
    %v261 = vld [vmem:[#allocation8 + $0x58] sm:$0xff]
    %v262 = vld [vmem:[#allocation8 + $0x60] sm:$0xff]
    %v263 = vld [vmem:[#allocation8 + $0x68] sm:$0xff]
    %v264 = vld [vmem:[#allocation8 + $0x70] sm:$0xff]
    %v265 = vld [vmem:[#allocation8 + $0x78] sm:$0xff]
    %266 = vmatprep.subr.mxu0 0.0
    %267 = vmatpush1.msra.mxu0 %v250
    %268 = vmatprep.subr.mxu0 0.0
    %269 = vmatpush1.msra.mxu0 %v251
    %270 = vmatprep.subr.mxu0 0.0
    %271 = vmatpush1.msra.mxu0 %v252
    %272 = vmatprep.subr.mxu0 0.0
    %273 = vmatpush1.msra.mxu0 %v253
    %274 = vmatprep.subr.mxu0 0.0
    %275 = vmatpush1.msra.mxu0 %v254
    %276 = vmatprep.subr.mxu0 0.0
    %277 = vmatpush1.msra.mxu0 %v255
    %278 = vmatprep.subr.mxu0 0.0
    %279 = vmatpush1.msra.mxu0 %v256
    %280 = vmatprep.subr.mxu0 0.0
    %281 = vmatpush1.msra.mxu0 %v257
    %282 = vmatprep.subr.mxu0 0.0
    %283 = vmatpush1.msra.mxu0 %v258
    %284 = vmatprep.subr.mxu0 0.0
    %285 = vmatpush1.msra.mxu0 %v259
    %286 = vmatprep.subr.mxu0 0.0
    %287 = vmatpush1.msra.mxu0 %v260
    %288 = vmatprep.subr.mxu0 0.0
    %289 = vmatpush1.msra.mxu0 %v261
    %290 = vmatprep.subr.mxu0 0.0
    %291 = vmatpush1.msra.mxu0 %v262
    %292 = vmatprep.subr.mxu0 0.0
    %293 = vmatpush1.msra.mxu0 %v263
    %294 = vmatprep.subr.mxu0 0.0
    %295 = vmatpush1.msra.mxu0 %v264
    %296 = vmatprep.subr.mxu0 0.0
    %297 = vmatpush1.msra.mxu0 %v265
    %298 = vmatprep.subr.mxu0 0.0
    %299 = vmatpush1.msra.mxu0 0.0
    %300 = vmatprep.subr.mxu0 0.0
    %301 = vmatpush1.msra.mxu0 0.0
    %302 = vmatprep.subr.mxu0 0.0
    %303 = vmatpush1.msra.mxu0 0.0
    %304 = vmatprep.subr.mxu0 0.0
    %305 = vmatpush1.msra.mxu0 0.0
    %306 = vmatprep.subr.mxu0 0.0
    %307 = vmatpush1.msra.mxu0 0.0
    %308 = vmatprep.subr.mxu0 0.0
    %309 = vmatpush1.msra.mxu0 0.0
    %310 = vmatprep.subr.mxu0 0.0
    %311 = vmatpush1.msra.mxu0 0.0
    %312 = vmatprep.subr.mxu0 0.0
    %313 = vmatpush1.msra.mxu0 0.0
    %314 = vmatprep.subr.mxu0 0.0
    %315 = vmatpush1.msra.mxu0 0.0
    %316 = vmatprep.subr.mxu0 0.0
    %317 = vmatpush1.msra.mxu0 0.0
    %318 = vmatprep.subr.mxu0 0.0
    %319 = vmatpush1.msra.mxu0 0.0
    %320 = vmatprep.subr.mxu0 0.0
    %321 = vmatpush1.msra.mxu0 0.0
    %322 = vmatprep.subr.mxu0 0.0
    %323 = vmatpush1.msra.mxu0 0.0
    %324 = vmatprep.subr.mxu0 0.0
    %325 = vmatpush1.msra.mxu0 0.0
    %326 = vmatprep.subr.mxu0 0.0
    %327 = vmatpush1.msra.mxu0 0.0
    %328 = vmatprep.subr.mxu0 0.0
    %329 = vmatpush1.msra.mxu0 0.0
    %330 = vmatprep.mubr.f32.mxu0 0.0
    %331 = vmatmul.mubr.f32.gmra.mrb[0].mxu0 %v249
    %v332 = vpop.f32.mrb[0].mxu0
    %v333 = vadd.f32 0.0, %v332
    %v334 = vpop.f32.mrb[0].mxu0
    %335 = vdwg.mxu0
    %v336 = vadd.f32 %v248, %v333
    %v337 = vmul.f32 %v336, 0.5
    %v338 = vld [vmem:[%s5] sm:$0x1]
    %v340 = vlaneseq
    %v341 = vshrl.u32 %v340, 7
    %v342 = vsub.s32 0, %v341
    %v343 = vrot.slane %v338, %v342
    %v345 = vadd.f32 %v337, %v343
    %346 = vst [vmem:[#allocation10] sm:$0xf] %v345
    // Predicated region
    $region42: #{tpu_custom_call.1} parent=1 // pred_check
      _
    $region43: #{tpu_custom_call.1} parent=1 // pred_check_branch
      %348 = sbr.rel (0) target = $region45
    $region44: #{tpu_custom_call.1} parent=1 // pred_region
      %s350 = ssub.s32 64, 64
      %351 = vsyncadd [#allocation4], %s350
      %s353 = sshll.u32 [#allocation10], 4
      %s354 = int_to_ptr.vmem [resolvable:$true] %s353
      %356 = dma.vmem_to_hbm [thread:$0]  %s354, 64, %s6, [#allocation4]
    $region45: #{tpu_custom_call.1} parent=1 // pred_fallthru
      _
    // Predicated region
    $region46: #{tpu_custom_call.1} parent=1 // pred_check
      _
    $region47: #{tpu_custom_call.1} parent=1 // pred_check_branch
      %358 = sbr.rel (0) target = $region49
    $region48: #{tpu_custom_call.1} parent=1 // pred_region
      %359 = dma.done [#allocation4], 64
    $region49: #{tpu_custom_call.1} parent=1 // pred_fallthru
      _
    %360 = vsyncpa [#allocation3], 1
    %361 = vsyncpa [#allocation6], 1
    %362 = vsyncpa [#allocation9], 1
    %363 = vsyncpa [#allocation4], 1

</llo_original>
